<compile_context>
chip_gen: v5e
topology: v5e:2x2
jax: 0.10.0
libtpu: 0.0.40
codegen_flags: <defaults>
</compile_context>

<pallas_src>
import functools

import jax
import jax.numpy as jnp
from jax.experimental import pallas as pl
from jax.experimental.pallas import tpu as pltpu

_LANE = 128


def _round_up(n, m):
    return ((n + m - 1) // m) * m


def _mlp_kernel(x_ref, w1_ref, b1_ref, wm_ref, bm_ref, g_ref, beta_ref,
                wo_ref, bo_ref, o_ref, *, mid_layers, batch):
    eps = 1e-5
    inv_b = 1.0 / batch

    # Hoisted loop-invariant loads (avoid re-emitting vld + broadcast per iter).
    wm = wm_ref[...]        # bf16 (mid_p, mid_p)
    bm = bm_ref[...]        # f32  (1, mid_p)
    gamma = g_ref[...]      # f32  (1, mid_p)
    beta = beta_ref[...]    # f32  (1, mid_p)

    # First linear + ReLU: bf16 MXU inputs, f32 accumulation & elementwise.
    h = jnp.dot(x_ref[...], w1_ref[...],
                preferred_element_type=jnp.float32) + b1_ref[...]
    h = jnp.maximum(h, 0.0)

    def mid_layer(h):
        z = jnp.dot(h.astype(jnp.bfloat16), wm,
                    preferred_element_type=jnp.float32) + bm
        # Fused single-pass batch statistics (training-mode BN, biased variance).
        s1 = jnp.sum(z, axis=0, keepdims=True)
        s2 = jnp.sum(z * z, axis=0, keepdims=True)
        mean = s1 * inv_b
        var = jnp.maximum(s2 * inv_b - mean * mean, 0.0)
        zn = (z - mean) * jax.lax.rsqrt(var + eps)
        return jnp.maximum(zn * gamma + beta, 0.0)

    if mid_layers <= 4:
        for _ in range(mid_layers):           # small count: static unroll is fine
            h = mid_layer(h)
    else:
        h = jax.lax.fori_loop(0, mid_layers, lambda i, hh: mid_layer(hh), h)

    # Output linear + ReLU; lane-dense (padded to 128) store.
    y = jnp.dot(h.astype(jnp.bfloat16), wo_ref[...],
                preferred_element_type=jnp.float32) + bo_ref[...]
    o_ref[...] = jnp.maximum(y, 0.0)


def mlp_net_forward(x, params, mid_layers):
    """x: (B, input_size) f32.  params: (in,out)-layout weights, (1,out) biases."""
    B, input_size = x.shape
    mid_size = params["wm"].shape[0]
    output_size = params["wo"].shape[1]

    in_p = _round_up(input_size, _LANE)
    mid_p = _round_up(mid_size, _LANE)
    out_p = _round_up(output_size, _LANE)

    def pad2(a, rows, cols, dtype):
        a = a.astype(dtype)
        return jnp.pad(a, ((0, rows - a.shape[0]), (0, cols - a.shape[1])))

    # bf16 for matmul operands; f32 for biases / BN params.
    xp = pad2(x,               B,     in_p,  jnp.bfloat16)
    w1 = pad2(params["w1"],    in_p,  mid_p, jnp.bfloat16)
    b1 = pad2(params["b1"],    1,     mid_p, jnp.float32)
    wm = pad2(params["wm"],    mid_p, mid_p, jnp.bfloat16)
    bm = pad2(params["bm"],    1,     mid_p, jnp.float32)
    gm = pad2(params["gamma"], 1,     mid_p, jnp.float32)
    bt = pad2(params["beta"],  1,     mid_p, jnp.float32)
    wo = pad2(params["wo"],    mid_p, out_p, jnp.bfloat16)
    bo = pad2(params["bo"],    1,     out_p, jnp.float32)

    args = (xp, w1, b1, wm, bm, gm, bt, wo, bo)

    kernel = functools.partial(_mlp_kernel, mid_layers=mid_layers, batch=B)

    def full(a):
        return pl.BlockSpec(a.shape, lambda: (0,) * a.ndim)

    out_padded = pl.pallas_call(
        kernel,
        out_shape=jax.ShapeDtypeStruct((B, out_p), jnp.float32),
        grid=(),
        in_specs=[full(a) for a in args],
        out_specs=pl.BlockSpec((B, out_p), lambda: (0, 0)),
        compiler_params=pltpu.CompilerParams(vmem_limit_bytes=16 << 20),
    )(*args)

    return out_padded[:, :output_size]


def init_params(key, input_size, mid_size, output_size):
    """Deterministic init mimicking nn.Linear / nn.BatchNorm1d defaults.
    Weights stored transposed: (in_features, out_features)."""
    ks = jax.random.split(key, 6)

    def linear(kw, kb, fan_in, fan_out):
        bound = 1.0 / jnp.sqrt(fan_in)
        w = jax.random.uniform(kw, (fan_in, fan_out), jnp.float32, -bound, bound)
        b = jax.random.uniform(kb, (1, fan_out), jnp.float32, -bound, bound)
        return w, b

    w1, b1 = linear(ks[0], ks[1], input_size, mid_size)
    wm, bm = linear(ks[2], ks[3], mid_size, mid_size)
    wo, bo = linear(ks[4], ks[5], mid_size, output_size)
    gamma = jnp.ones((1, mid_size), jnp.float32)   # BN weight
    beta = jnp.zeros((1, mid_size), jnp.float32)   # BN bias
    return dict(w1=w1, b1=b1, wm=wm, bm=bm, gamma=gamma, beta=beta,
                wo=wo, bo=bo)


def reference_forward(x, p, mid_layers, matmul_dtype=jnp.float32):
    """Pure-JAX reference.  matmul_dtype=bfloat16 reproduces the kernel's MXU
    numerics; float32 reproduces the original PyTorch f32 module."""
    eps = 1e-5

    def mm(a, w):
        return jnp.dot(a.astype(matmul_dtype), w.astype(matmul_dtype),
                       preferred_element_type=jnp.float32)

    h = jnp.maximum(mm(x, p["w1"]) + p["b1"], 0.0)
    for _ in range(mid_layers):
        z = mm(h, p["wm"]) + p["bm"]
        mean = jnp.mean(z, axis=0, keepdims=True)
        var = jnp.mean((z - mean) ** 2, axis=0, keepdims=True)
        zn = (z - mean) * jax.lax.rsqrt(var + eps)
        h = jnp.maximum(zn * p["gamma"] + p["beta"], 0.0)
    return jnp.maximum(mm(h, p["wo"]) + p["bo"], 0.0)


if __name__ == "__main__":
    # Small shapes consistent with the module: x is (batch, input_size).
    batch, input_size, mid_size, output_size, mid_layers = 8, 32, 32, 16, 2

    key = jax.random.PRNGKey(0)
    kx, kp = jax.random.split(key)
    x = jax.random.normal(kx, (batch, input_size), jnp.float32)
    params = init_params(kp, input_size, mid_size, output_size)

    out = mlp_net_forward(x, params, mid_layers)
    out = jax.block_until_ready(out)

    assert out.shape == (batch, output_size)

    # Tight check against a bf16-matmul reference (matches kernel numerics).
    ref_bf16 = reference_forward(x, params, mid_layers, jnp.bfloat16)
    assert jnp.allclose(out, ref_bf16, atol=5e-3, rtol=5e-3), "mismatch vs bf16 reference"

    # Loose sanity check against the full-f32 PyTorch-equivalent math.
    ref_f32 = reference_forward(x, params, mid_layers, jnp.float32)
    assert jnp.allclose(out, ref_f32, atol=1e-1, rtol=1e-1), "mismatch vs f32 reference"

    print("KERNEL_OK")
</pallas_src>

<mosaic_0001>
module attributes {stable_mosaic.version = 11 : i64} {
  func.func @_mlp_kernel(%arg0: memref<8x128xbf16, #tpu.memory_space<vmem>>, %arg1: memref<128x128xbf16, #tpu.memory_space<vmem>>, %arg2: memref<1x128xf32, #tpu.memory_space<vmem>>, %arg3: memref<128x128xbf16, #tpu.memory_space<vmem>>, %arg4: memref<1x128xf32, #tpu.memory_space<vmem>>, %arg5: memref<1x128xf32, #tpu.memory_space<vmem>>, %arg6: memref<1x128xf32, #tpu.memory_space<vmem>>, %arg7: memref<128x128xbf16, #tpu.memory_space<vmem>>, %arg8: memref<1x128xf32, #tpu.memory_space<vmem>>, %arg9: memref<8x128xf32, #tpu.memory_space<vmem>>) attributes {dimension_semantics = [], scalar_prefetch = 0 : i64, scratch_operands = 0 : i64, tpu.core_type = #tpu.core_type<tc>} {
    %c0 = arith.constant 0 : index
    %c0_0 = arith.constant 0 : index
    %0 = vector.load %arg3[%c0, %c0_0] : memref<128x128xbf16, #tpu.memory_space<vmem>>, vector<128x128xbf16>
    %c0_1 = arith.constant 0 : index
    %c0_2 = arith.constant 0 : index
    %1 = vector.load %arg4[%c0_1, %c0_2] : memref<1x128xf32, #tpu.memory_space<vmem>>, vector<1x128xf32>
    %c0_3 = arith.constant 0 : index
    %c0_4 = arith.constant 0 : index
    %2 = vector.load %arg5[%c0_3, %c0_4] : memref<1x128xf32, #tpu.memory_space<vmem>>, vector<1x128xf32>
    %c0_5 = arith.constant 0 : index
    %c0_6 = arith.constant 0 : index
    %3 = vector.load %arg6[%c0_5, %c0_6] : memref<1x128xf32, #tpu.memory_space<vmem>>, vector<1x128xf32>
    %c0_7 = arith.constant 0 : index
    %c0_8 = arith.constant 0 : index
    %4 = vector.load %arg0[%c0_7, %c0_8] : memref<8x128xbf16, #tpu.memory_space<vmem>>, vector<8x128xbf16>
    %c0_9 = arith.constant 0 : index
    %c0_10 = arith.constant 0 : index
    %5 = vector.load %arg1[%c0_9, %c0_10] : memref<128x128xbf16, #tpu.memory_space<vmem>>, vector<128x128xbf16>
    %cst = arith.constant dense<0.000000e+00> : vector<8x128xf32>
    %6 = tpu.matmul %4, %5, %cst {dimension_numbers = #tpu.dot_dimension_numbers<[1], [0], [0], [1], [0, 0, 1, 1], [], []>} : vector<8x128xbf16>, vector<128x128xbf16>, vector<8x128xf32> -> vector<8x128xf32>
    %c0_11 = arith.constant 0 : index
    %c0_12 = arith.constant 0 : index
    %7 = vector.load %arg2[%c0_11, %c0_12] : memref<1x128xf32, #tpu.memory_space<vmem>>, vector<1x128xf32>
    %8 = vector.broadcast %7 : vector<1x128xf32> to vector<8x128xf32>
    %9 = arith.addf %6, %8 : vector<8x128xf32>
    %cst_13 = arith.constant 0.000000e+00 : f32
    %10 = vector.broadcast %cst_13 : f32 to vector<8x128xf32>
    %11 = arith.maximumf %9, %10 : vector<8x128xf32>
    %12 = arith.truncf %11 : vector<8x128xf32> to vector<8x128xbf16>
    %cst_14 = arith.constant dense<0.000000e+00> : vector<8x128xf32>
    %13 = tpu.matmul %12, %0, %cst_14 {dimension_numbers = #tpu.dot_dimension_numbers<[1], [0], [0], [1], [0, 0, 1, 1], [], []>} : vector<8x128xbf16>, vector<128x128xbf16>, vector<8x128xf32> -> vector<8x128xf32>
    %14 = vector.broadcast %1 : vector<1x128xf32> to vector<8x128xf32>
    %15 = arith.addf %13, %14 : vector<8x128xf32>
    %cst_15 = arith.constant dense<0.000000e+00> : vector<128xf32>
    %16 = vector.multi_reduction <add>, %15, %cst_15 [0] : vector<8x128xf32> to vector<128xf32>
    %17 = vector.shape_cast %16 : vector<128xf32> to vector<1x128xf32>
    %18 = arith.mulf %15, %15 : vector<8x128xf32>
    %cst_16 = arith.constant dense<0.000000e+00> : vector<128xf32>
    %19 = vector.multi_reduction <add>, %18, %cst_16 [0] : vector<8x128xf32> to vector<128xf32>
    %20 = vector.shape_cast %19 : vector<128xf32> to vector<1x128xf32>
    %cst_17 = arith.constant 1.250000e-01 : f32
    %21 = vector.broadcast %cst_17 : f32 to vector<1x128xf32>
    %22 = arith.mulf %17, %21 : vector<1x128xf32>
    %cst_18 = arith.constant 1.250000e-01 : f32
    %23 = vector.broadcast %cst_18 : f32 to vector<1x128xf32>
    %24 = arith.mulf %20, %23 : vector<1x128xf32>
    %25 = arith.mulf %22, %22 : vector<1x128xf32>
    %26 = arith.subf %24, %25 : vector<1x128xf32>
    %cst_19 = arith.constant 0.000000e+00 : f32
    %27 = vector.broadcast %cst_19 : f32 to vector<1x128xf32>
    %28 = arith.maximumf %26, %27 : vector<1x128xf32>
    %29 = vector.broadcast %22 : vector<1x128xf32> to vector<8x128xf32>
    %30 = arith.subf %15, %29 : vector<8x128xf32>
    %cst_20 = arith.constant 9.99999974E-6 : f32
    %31 = vector.broadcast %cst_20 : f32 to vector<1x128xf32>
    %32 = arith.addf %28, %31 : vector<1x128xf32>
    %33 = math.rsqrt %32 : vector<1x128xf32>
    %34 = vector.broadcast %33 : vector<1x128xf32> to vector<8x128xf32>
    %35 = arith.mulf %30, %34 : vector<8x128xf32>
    %36 = vector.broadcast %2 : vector<1x128xf32> to vector<8x128xf32>
    %37 = arith.mulf %35, %36 : vector<8x128xf32>
    %38 = vector.broadcast %3 : vector<1x128xf32> to vector<8x128xf32>
    %39 = arith.addf %37, %38 : vector<8x128xf32>
    %cst_21 = arith.constant 0.000000e+00 : f32
    %40 = vector.broadcast %cst_21 : f32 to vector<8x128xf32>
    %41 = arith.maximumf %39, %40 : vector<8x128xf32>
    %42 = arith.truncf %41 : vector<8x128xf32> to vector<8x128xbf16>
    %cst_22 = arith.constant dense<0.000000e+00> : vector<8x128xf32>
    %43 = tpu.matmul %42, %0, %cst_22 {dimension_numbers = #tpu.dot_dimension_numbers<[1], [0], [0], [1], [0, 0, 1, 1], [], []>} : vector<8x128xbf16>, vector<128x128xbf16>, vector<8x128xf32> -> vector<8x128xf32>
    %44 = vector.broadcast %1 : vector<1x128xf32> to vector<8x128xf32>
    %45 = arith.addf %43, %44 : vector<8x128xf32>
    %cst_23 = arith.constant dense<0.000000e+00> : vector<128xf32>
    %46 = vector.multi_reduction <add>, %45, %cst_23 [0] : vector<8x128xf32> to vector<128xf32>
    %47 = vector.shape_cast %46 : vector<128xf32> to vector<1x128xf32>
    %48 = arith.mulf %45, %45 : vector<8x128xf32>
    %cst_24 = arith.constant dense<0.000000e+00> : vector<128xf32>
    %49 = vector.multi_reduction <add>, %48, %cst_24 [0] : vector<8x128xf32> to vector<128xf32>
    %50 = vector.shape_cast %49 : vector<128xf32> to vector<1x128xf32>
    %cst_25 = arith.constant 1.250000e-01 : f32
    %51 = vector.broadcast %cst_25 : f32 to vector<1x128xf32>
    %52 = arith.mulf %47, %51 : vector<1x128xf32>
    %cst_26 = arith.constant 1.250000e-01 : f32
    %53 = vector.broadcast %cst_26 : f32 to vector<1x128xf32>
    %54 = arith.mulf %50, %53 : vector<1x128xf32>
    %55 = arith.mulf %52, %52 : vector<1x128xf32>
    %56 = arith.subf %54, %55 : vector<1x128xf32>
    %cst_27 = arith.constant 0.000000e+00 : f32
    %57 = vector.broadcast %cst_27 : f32 to vector<1x128xf32>
    %58 = arith.maximumf %56, %57 : vector<1x128xf32>
    %59 = vector.broadcast %52 : vector<1x128xf32> to vector<8x128xf32>
    %60 = arith.subf %45, %59 : vector<8x128xf32>
    %cst_28 = arith.constant 9.99999974E-6 : f32
    %61 = vector.broadcast %cst_28 : f32 to vector<1x128xf32>
    %62 = arith.addf %58, %61 : vector<1x128xf32>
    %63 = math.rsqrt %62 : vector<1x128xf32>
    %64 = vector.broadcast %63 : vector<1x128xf32> to vector<8x128xf32>
    %65 = arith.mulf %60, %64 : vector<8x128xf32>
    %66 = vector.broadcast %2 : vector<1x128xf32> to vector<8x128xf32>
    %67 = arith.mulf %65, %66 : vector<8x128xf32>
    %68 = vector.broadcast %3 : vector<1x128xf32> to vector<8x128xf32>
    %69 = arith.addf %67, %68 : vector<8x128xf32>
    %cst_29 = arith.constant 0.000000e+00 : f32
    %70 = vector.broadcast %cst_29 : f32 to vector<8x128xf32>
    %71 = arith.maximumf %69, %70 : vector<8x128xf32>
    %72 = arith.truncf %71 : vector<8x128xf32> to vector<8x128xbf16>
    %c0_30 = arith.constant 0 : index
    %c0_31 = arith.constant 0 : index
    %73 = vector.load %arg7[%c0_30, %c0_31] : memref<128x128xbf16, #tpu.memory_space<vmem>>, vector<128x128xbf16>
    %cst_32 = arith.constant dense<0.000000e+00> : vector<8x128xf32>
    %74 = tpu.matmul %72, %73, %cst_32 {dimension_numbers = #tpu.dot_dimension_numbers<[1], [0], [0], [1], [0, 0, 1, 1], [], []>} : vector<8x128xbf16>, vector<128x128xbf16>, vector<8x128xf32> -> vector<8x128xf32>
    %c0_33 = arith.constant 0 : index
    %c0_34 = arith.constant 0 : index
    %75 = vector.load %arg8[%c0_33, %c0_34] : memref<1x128xf32, #tpu.memory_space<vmem>>, vector<1x128xf32>
    %76 = vector.broadcast %75 : vector<1x128xf32> to vector<8x128xf32>
    %77 = arith.addf %74, %76 : vector<8x128xf32>
    %cst_35 = arith.constant 0.000000e+00 : f32
    %78 = vector.broadcast %cst_35 : f32 to vector<8x128xf32>
    %79 = arith.maximumf %77, %78 : vector<8x128xf32>
    %c0_36 = arith.constant 0 : index
    %c0_37 = arith.constant 0 : index
    %80 = vector.load %arg9[%c0_36, %c0_37] : memref<8x128xf32, #tpu.memory_space<vmem>>, vector<8x128xf32>
    tpu.vector_store %arg9[%c0_36, %c0_37], %79 {strides = array<i32>} : memref<8x128xf32, #tpu.memory_space<vmem>>, vector<8x128xf32>,
    return
  }
}

</mosaic_0001>

<llo_original>
// kernel: tpu_custom_call.1
$region0: #{tpu_custom_call.1}
  #allocation0 [shape = 'u32[]', space=smem, size = 0x4, offset = 0x4, fixed_abs, tag = 'smem constant byte address 0x4 - core index']
  #allocation1 [shape = 'u32[72,128]{1,0:T(1,128)}', space=vmem, size = 0x9000, scoped, tag = 'internal scratch']
  %s0 = inlined_call_operand.hbm [shape: bf16[8,128], index: 0, kind: input, shape index: {}]
  %s1 = inlined_call_operand.hbm [shape: bf16[128,128], index: 1, kind: input, shape index: {}]
  %s2 = inlined_call_operand.vmem [shape: f32[1,128], index: 2, kind: input, shape index: {}]
  %s3 = inlined_call_operand.hbm [shape: bf16[128,128], index: 3, kind: input, shape index: {}]
  %s4 = inlined_call_operand.vmem [shape: f32[1,128], index: 4, kind: input, shape index: {}]
  %s5 = inlined_call_operand.vmem [shape: f32[1,128], index: 5, kind: input, shape index: {}]
  %s6 = inlined_call_operand.vmem [shape: f32[1,128], index: 6, kind: input, shape index: {}]
  %s7 = inlined_call_operand.hbm [shape: bf16[128,128], index: 7, kind: input, shape index: {}]
  %s8 = inlined_call_operand.vmem [shape: f32[1,128], index: 8, kind: input, shape index: {}]
  %s9 = inlined_call_operand.hbm [shape: f32[8,128], index: 9, kind: output, shape index: {}]
  %s10 = sld [smem:[#allocation0]]
  $region62: #{tpu_custom_call.1} parent=0
    _
  %s12 = ssub.s32 1, %s10
  %s13 = scalar_select 0, %s12, %s10
  $region1: #{tpu_custom_call.1} parent=0
    #allocation2 [shape = 'u8[2048]{0}', space=vmem, size = 0x800, scoped, tag = 'input window, operand 0, single buffered']
    #allocation3 [shape = 's32[1]{0}', space=sflag, size = 0x4, scoped, tag = 'scoped memory for tpu_custom_call.1']
    #allocation4 [shape = 's32[1]{0}', space=sflag, size = 0x4, scoped, tag = 'scoped memory for tpu_custom_call.1']
    #allocation5 [shape = 'u8[32768]{0}', space=vmem, size = 0x8000, scoped, tag = 'input window, operand 1, single buffered']
    #allocation6 [shape = 's32[1]{0}', space=sflag, size = 0x4, scoped, tag = 'scoped memory for tpu_custom_call.1']
    #allocation7 [shape = 'u8[32768]{0}', space=vmem, size = 0x8000, scoped, tag = 'input window, operand 3, single buffered']
    #allocation8 [shape = 'u8[32768]{0}', space=vmem, size = 0x8000, scoped, tag = 'input window, operand 7, single buffered']
    #allocation9 [shape = 's32[1]{0}', space=sflag, size = 0x4, scoped, tag = 'scoped memory for tpu_custom_call.1']
    #allocation10 [shape = 'u8[4096]{0}', space=vmem, size = 0x1000, scoped, tag = 'output window, operand 0, single buffered']
    %14 = vsyncpa [#allocation3], 0
    %15 = vsyncpa [#allocation6], 0
    %16 = vsyncpa [#allocation9], 0
    %17 = vsyncpa [#allocation4], 0
    // Predicated region
    $region2: #{tpu_custom_call.1} parent=1 // pred_check
      _
    $region3: #{tpu_custom_call.1} parent=1 // pred_check_branch
      %19 = sbr.rel (0) target = $region5
    $region4: #{tpu_custom_call.1} parent=1 // pred_region
      %21 = vsyncadd [#allocation3], 0
      %s23 = sshll.u32 %s0, 4
      %s24 = int_to_ptr.hbm [resolvable:$true] %s23
      %s25 = sshll.u32 [#allocation2], 4
      %s26 = int_to_ptr.vmem [resolvable:$true] %s25
      %28 = dma.hbm_to_vmem [thread:$0]  %s24, 64, %s26, [#allocation3]
    $region5: #{tpu_custom_call.1} parent=1 // pred_fallthru
      _
    // Predicated region
    $region6: #{tpu_custom_call.1} parent=1 // pred_check
      _
    $region7: #{tpu_custom_call.1} parent=1 // pred_check_branch
      %30 = sbr.rel (0) target = $region9
    $region8: #{tpu_custom_call.1} parent=1 // pred_region
      %32 = vsyncadd [#allocation6], 0
      %s33 = sshll.u32 %s1, 4
      %s34 = int_to_ptr.hbm [resolvable:$true] %s33
      %s35 = sshll.u32 [#allocation5], 4
      %s36 = int_to_ptr.vmem [resolvable:$true] %s35
      %41 = dma.hbm_to_vmem [thread:$0]  %s34, 1024, %s36, [#allocation6], 64, 64, 4
    $region9: #{tpu_custom_call.1} parent=1 // pred_fallthru
      _
    // Predicated region
    $region10: #{tpu_custom_call.1} parent=1 // pred_check
      _
    $region11: #{tpu_custom_call.1} parent=1 // pred_check_branch
      %43 = sbr.rel (0) target = $region13
    $region12: #{tpu_custom_call.1} parent=1 // pred_region
      _
    $region13: #{tpu_custom_call.1} parent=1 // pred_fallthru
      _
    // Predicated region
    $region14: #{tpu_custom_call.1} parent=1 // pred_check
      _
    $region15: #{tpu_custom_call.1} parent=1 // pred_check_branch
      %45 = sbr.rel (0) target = $region17
    $region16: #{tpu_custom_call.1} parent=1 // pred_region
      %47 = vsyncadd [#allocation6], 0
      %s48 = sshll.u32 %s3, 4
      %s49 = int_to_ptr.hbm [resolvable:$true] %s48
      %s50 = sshll.u32 [#allocation7], 4
      %s51 = int_to_ptr.vmem [resolvable:$true] %s50
      %56 = dma.hbm_to_vmem [thread:$0]  %s49, 1024, %s51, [#allocation6], 64, 64, 4
    $region17: #{tpu_custom_call.1} parent=1 // pred_fallthru
      _
    // Predicated region
    $region18: #{tpu_custom_call.1} parent=1 // pred_check
      _
    $region19: #{tpu_custom_call.1} parent=1 // pred_check_branch
      %58 = sbr.rel (0) target = $region21
    $region20: #{tpu_custom_call.1} parent=1 // pred_region
      _
    $region21: #{tpu_custom_call.1} parent=1 // pred_fallthru
      _
    // Predicated region
    $region22: #{tpu_custom_call.1} parent=1 // pred_check
      _
    $region23: #{tpu_custom_call.1} parent=1 // pred_check_branch
      %60 = sbr.rel (0) target = $region25
    $region24: #{tpu_custom_call.1} parent=1 // pred_region
      _
    $region25: #{tpu_custom_call.1} parent=1 // pred_fallthru
      _
    // Predicated region
    $region26: #{tpu_custom_call.1} parent=1 // pred_check
      _
    $region27: #{tpu_custom_call.1} parent=1 // pred_check_branch
      %62 = sbr.rel (0) target = $region29
    $region28: #{tpu_custom_call.1} parent=1 // pred_region
      _
    $region29: #{tpu_custom_call.1} parent=1 // pred_fallthru
      _
    // Predicated region
    $region30: #{tpu_custom_call.1} parent=1 // pred_check
      _
    $region31: #{tpu_custom_call.1} parent=1 // pred_check_branch
      %64 = sbr.rel (0) target = $region33
    $region32: #{tpu_custom_call.1} parent=1 // pred_region
      %66 = vsyncadd [#allocation9], 0
      %s67 = sshll.u32 %s7, 4
      %s68 = int_to_ptr.hbm [resolvable:$true] %s67
      %s69 = sshll.u32 [#allocation8], 4
      %s70 = int_to_ptr.vmem [resolvable:$true] %s69
      %75 = dma.hbm_to_vmem [thread:$0]  %s68, 1024, %s70, [#allocation9], 64, 64, 4
    $region33: #{tpu_custom_call.1} parent=1 // pred_fallthru
      _
    // Predicated region
    $region34: #{tpu_custom_call.1} parent=1 // pred_check
      _
    $region35: #{tpu_custom_call.1} parent=1 // pred_check_branch
      %77 = sbr.rel (0) target = $region37
    $region36: #{tpu_custom_call.1} parent=1 // pred_region
      _
    $region37: #{tpu_custom_call.1} parent=1 // pred_fallthru
      _
    // Predicated region
    $region38: #{tpu_custom_call.1} parent=1 // pred_check
      _
    $region39: #{tpu_custom_call.1} parent=1 // pred_check_branch
      %79 = sbr.rel (0) target = $region41
    $region40: #{tpu_custom_call.1} parent=1 // pred_region
      %81 = dma.done [#allocation3], 64
    $region41: #{tpu_custom_call.1} parent=1 // pred_fallthru
      _
    // Predicated region
    $region42: #{tpu_custom_call.1} parent=1 // pred_check
      _
    $region43: #{tpu_custom_call.1} parent=1 // pred_check_branch
      %83 = sbr.rel (0) target = $region45
    $region44: #{tpu_custom_call.1} parent=1 // pred_region
      %85 = dma.done [#allocation6], 1024
    $region45: #{tpu_custom_call.1} parent=1 // pred_fallthru
      _
    // Predicated region
    $region46: #{tpu_custom_call.1} parent=1 // pred_check
      _
    $region47: #{tpu_custom_call.1} parent=1 // pred_check_branch
      %87 = sbr.rel (0) target = $region49
    $region48: #{tpu_custom_call.1} parent=1 // pred_region
      %89 = dma.done [#allocation6], 1024
    $region49: #{tpu_custom_call.1} parent=1 // pred_fallthru
      _
    // Predicated region
    $region50: #{tpu_custom_call.1} parent=1 // pred_check
      _
    $region51: #{tpu_custom_call.1} parent=1 // pred_check_branch
      %91 = sbr.rel (0) target = $region53
    $region52: #{tpu_custom_call.1} parent=1 // pred_region
      %93 = dma.done [#allocation9], 1024
    $region53: #{tpu_custom_call.1} parent=1 // pred_fallthru
      _
    %v94 = vld [vmem:[#allocation7] sm:$0xf]
    %v95 = vld [vmem:[#allocation7 + $0x4] sm:$0xf]
    %v96 = vld [vmem:[#allocation7 + $0x8] sm:$0xf]
    %v97 = vld [vmem:[#allocation7 + $0xc] sm:$0xf]
    %v98 = vld [vmem:[#allocation7 + $0x10] sm:$0xf]
    %v99 = vld [vmem:[#allocation7 + $0x14] sm:$0xf]
    %v100 = vld [vmem:[#allocation7 + $0x18] sm:$0xf]
    %v101 = vld [vmem:[#allocation7 + $0x1c] sm:$0xf]
    %v102 = vld [vmem:[#allocation7 + $0x20] sm:$0xf]
    %v103 = vld [vmem:[#allocation7 + $0x24] sm:$0xf]
    %v104 = vld [vmem:[#allocation7 + $0x28] sm:$0xf]
    %v105 = vld [vmem:[#allocation7 + $0x2c] sm:$0xf]
    %v106 = vld [vmem:[#allocation7 + $0x30] sm:$0xf]
    %v107 = vld [vmem:[#allocation7 + $0x34] sm:$0xf]
    %v108 = vld [vmem:[#allocation7 + $0x38] sm:$0xf]
    %v109 = vld [vmem:[#allocation7 + $0x3c] sm:$0xf]
    %v110 = vld [vmem:[%s4] sm:$0x1]
    %v111 = vld [vmem:[%s5] sm:$0x1]
    %v112 = vld [vmem:[%s6] sm:$0x1]
    %v113 = vld [vmem:[#allocation2] sm:$0xf]
    %v114 = vld [vmem:[#allocation5] sm:$0xf]
    %v115 = vld [vmem:[#allocation5 + $0x4] sm:$0xf]
    %v116 = vld [vmem:[#allocation5 + $0x8] sm:$0xf]
    %v117 = vld [vmem:[#allocation5 + $0xc] sm:$0xf]
    %v118 = vld [vmem:[#allocation5 + $0x10] sm:$0xf]
    %v119 = vld [vmem:[#allocation5 + $0x14] sm:$0xf]
    %v120 = vld [vmem:[#allocation5 + $0x18] sm:$0xf]
    %v121 = vld [vmem:[#allocation5 + $0x1c] sm:$0xf]
    %v122 = vld [vmem:[#allocation5 + $0x20] sm:$0xf]
    %v123 = vld [vmem:[#allocation5 + $0x24] sm:$0xf]
    %v124 = vld [vmem:[#allocation5 + $0x28] sm:$0xf]
    %v125 = vld [vmem:[#allocation5 + $0x2c] sm:$0xf]
    %v126 = vld [vmem:[#allocation5 + $0x30] sm:$0xf]
    %v127 = vld [vmem:[#allocation5 + $0x34] sm:$0xf]
    %v128 = vld [vmem:[#allocation5 + $0x38] sm:$0xf]
    %v129 = vld [vmem:[#allocation5 + $0x3c] sm:$0xf]
    %v130 = vld [vmem:[%s2] sm:$0x1]
    %v132 = vperm.slane %v130, 0
    %v150 = vunpack.c.l.b16 %v114
    %v151 = vunpack.c.l.b16 %v115
    %v152 = vunpack.c.l.b16 %v116
    %v153 = vunpack.c.l.b16 %v117
    %v154 = vunpack.c.l.b16 %v118
    %v155 = vunpack.c.l.b16 %v119
    %v156 = vunpack.c.l.b16 %v120
    %v157 = vunpack.c.l.b16 %v121
    %v158 = vunpack.c.l.b16 %v122
    %v159 = vunpack.c.l.b16 %v123
    %v160 = vunpack.c.l.b16 %v124
    %v161 = vunpack.c.l.b16 %v125
    %v162 = vunpack.c.l.b16 %v126
    %v163 = vunpack.c.l.b16 %v127
    %v164 = vunpack.c.l.b16 %v128
    %v165 = vunpack.c.l.b16 %v129
    %v166 = vpack.c.b16 %v151, %v150
    %v167 = vpack.c.b16 %v153, %v152
    %v168 = vpack.c.b16 %v155, %v154
    %v169 = vpack.c.b16 %v157, %v156
    %v170 = vpack.c.b16 %v159, %v158
    %v171 = vpack.c.b16 %v161, %v160
    %v172 = vpack.c.b16 %v163, %v162
    %v173 = vpack.c.b16 %v165, %v164
    %182 = vmatpush.bf16.msra.mxu0 %v173
    %183 = vmatpush.bf16.msra.mxu0 %v172
    %184 = vmatpush.bf16.msra.mxu0 %v171
    %185 = vmatpush.bf16.msra.mxu0 %v170
    %186 = vmatpush.bf16.msra.mxu0 %v169
    %187 = vmatpush.bf16.msra.mxu0 %v168
    %188 = vmatpush.bf16.msra.mxu0 %v167
    %189 = vmatpush.bf16.msra.mxu0 %v166
    %190 = vmatmul.bf16.gmra.mxu0 %v113
    %v191 = vpop.f32.mrf.mxu0
    %v192 = vadd.f32 %v132, %v191
    %v193 = vpop.f32.mrf.mxu0
    %194 = vdwg.mxu0
    %v195 = vmax.f32 %v192, 0.0
    %v196 = vpack.c.bf16 %v195, %v195
    %v198 = vperm.slane %v110, 0
    %v216 = vunpack.c.l.b16 %v94
    %v217 = vunpack.c.l.b16 %v95
    %v218 = vunpack.c.l.b16 %v96
    %v219 = vunpack.c.l.b16 %v97
    %v220 = vunpack.c.l.b16 %v98
    %v221 = vunpack.c.l.b16 %v99
    %v222 = vunpack.c.l.b16 %v100
    %v223 = vunpack.c.l.b16 %v101
    %v224 = vunpack.c.l.b16 %v102
    %v225 = vunpack.c.l.b16 %v103
    %v226 = vunpack.c.l.b16 %v104
    %v227 = vunpack.c.l.b16 %v105
    %v228 = vunpack.c.l.b16 %v106
    %v229 = vunpack.c.l.b16 %v107
    %v230 = vunpack.c.l.b16 %v108
    %v231 = vunpack.c.l.b16 %v109
    %v232 = vpack.c.b16 %v217, %v216
    %v233 = vpack.c.b16 %v219, %v218
    %v234 = vpack.c.b16 %v221, %v220
    %v235 = vpack.c.b16 %v223, %v222
    %v236 = vpack.c.b16 %v225, %v224
    %v237 = vpack.c.b16 %v227, %v226
    %v238 = vpack.c.b16 %v229, %v228
    %v239 = vpack.c.b16 %v231, %v230
    %248 = vmatpush.bf16.msra.mxu0 %v239
    %249 = vmatpush.bf16.msra.mxu0 %v238
    %250 = vmatpush.bf16.msra.mxu0 %v237
    %251 = vmatpush.bf16.msra.mxu0 %v236
    %252 = vmatpush.bf16.msra.mxu0 %v235
    %253 = vmatpush.bf16.msra.mxu0 %v234
    %254 = vmatpush.bf16.msra.mxu0 %v233
    %255 = vmatpush.bf16.msra.mxu0 %v232
    %256 = vmatmul.bf16.gmra.mxu0 %v196
    %v257 = vpop.f32.mrf.mxu0
    %v258 = vadd.f32 %v198, %v257
    %v259 = vpop.f32.mrf.mxu0
    %260 = vdwg.mxu0
    %v261 = vrot.slane %v258, 4
    %v262 = vadd.f32 %v258, %v261
    %v263 = vrot.slane %v262, 2
    %v264 = vadd.f32 %v262, %v263
    %v265 = vrot.slane %v264, 1
    %v266 = vadd.f32 %v264, %v265
    %v267 = vmul.f32 %v258, %v258
    %v268 = vrot.slane %v267, 4
    %v269 = vadd.f32 %v267, %v268
    %v270 = vrot.slane %v269, 2
    %v271 = vadd.f32 %v269, %v270
    %v272 = vrot.slane %v271, 1
    %v273 = vadd.f32 %v271, %v272
    %v274 = vmul.f32 %v266, 0.125
    %v275 = vmul.f32 %v273, 0.125
    %v276 = vmul.f32 %v274, %v274
    %v277 = vsub.f32 %v275, %v276
    %v278 = vmax.f32 %v277, 0.0
    %v279 = vsub.f32 %v258, %v274
    %v280 = vadd.f32 %v278, 1e-05
    %v281 = vrsqrt.pop %v280
    %v282 = vmul.f32 %v281, %v280
    %v283 = vmul.f32 %v282, %v281
    %v284 = vmul.f32 0.5, %v283
    %v285 = vsub.f32 1.5, %v284
    %v286 = vmul.f32 %v281, %v285
    %vm287 = vweird.f32 %v280
    %vm288 = vweird.f32 %v281
    %vm289 = vmor %vm287, %vm288
    %v290 = vsel %vm289, %v281, %v286
    %v291 = vmul.f32 %v279, %v290
    %v293 = vperm.slane %v111, 0
    %v295 = vmul.f32 %v291, %v293
    %v297 = vperm.slane %v112, 0
    %v299 = vadd.f32 %v295, %v297
    %v300 = vmax.f32 %v299, 0.0
    %v301 = vpack.c.bf16 %v300, %v300
    %302 = vmatpush.bf16.msra.mxu0 %v239
    %303 = vmatpush.bf16.msra.mxu0 %v238
    %304 = vmatpush.bf16.msra.mxu0 %v237
    %305 = vmatpush.bf16.msra.mxu0 %v236
    %306 = vmatpush.bf16.msra.mxu0 %v235
    %307 = vmatpush.bf16.msra.mxu0 %v234
    %308 = vmatpush.bf16.msra.mxu0 %v233
    %309 = vmatpush.bf16.msra.mxu0 %v232
    %310 = vmatmul.bf16.gmra.mxu0 %v301
    %v311 = vpop.f32.mrf.mxu0
    %v312 = vadd.f32 %v198, %v311
    %v313 = vpop.f32.mrf.mxu0
    %314 = vdwg.mxu0
    %v315 = vrot.slane %v312, 4
    %v316 = vadd.f32 %v312, %v315
    %v317 = vrot.slane %v316, 2
    %v318 = vadd.f32 %v316, %v317
    %v319 = vrot.slane %v318, 1
    %v320 = vadd.f32 %v318, %v319
    %v321 = vmul.f32 %v312, %v312
    %v322 = vrot.slane %v321, 4
    %v323 = vadd.f32 %v321, %v322
    %v324 = vrot.slane %v323, 2
    %v325 = vadd.f32 %v323, %v324
    %v326 = vrot.slane %v325, 1
    %v327 = vadd.f32 %v325, %v326
    %v328 = vmul.f32 %v320, 0.125
    %v329 = vmul.f32 %v327, 0.125
    %v330 = vmul.f32 %v328, %v328
    %v331 = vsub.f32 %v329, %v330
    %v332 = vmax.f32 %v331, 0.0
    %v333 = vsub.f32 %v312, %v328
    %v334 = vadd.f32 %v332, 1e-05
    %v335 = vrsqrt.pop %v334
    %v336 = vmul.f32 %v335, %v334
    %v337 = vmul.f32 %v336, %v335
    %v338 = vmul.f32 0.5, %v337
    %v339 = vsub.f32 1.5, %v338
    %v340 = vmul.f32 %v335, %v339
    %vm341 = vweird.f32 %v334
    %vm342 = vweird.f32 %v335
    %vm343 = vmor %vm341, %vm342
    %v344 = vsel %vm343, %v335, %v340
    %v345 = vmul.f32 %v333, %v344
    %v346 = vmul.f32 %v345, %v293
    %v347 = vadd.f32 %v346, %v297
    %v348 = vmax.f32 %v347, 0.0
    %v349 = vpack.c.bf16 %v348, %v348
    %v350 = vld [vmem:[#allocation8] sm:$0xf]
    %v351 = vld [vmem:[#allocation8 + $0x4] sm:$0xf]
    %v352 = vld [vmem:[#allocation8 + $0x8] sm:$0xf]
    %v353 = vld [vmem:[#allocation8 + $0xc] sm:$0xf]
    %v354 = vld [vmem:[#allocation8 + $0x10] sm:$0xf]
    %v355 = vld [vmem:[#allocation8 + $0x14] sm:$0xf]
    %v356 = vld [vmem:[#allocation8 + $0x18] sm:$0xf]
    %v357 = vld [vmem:[#allocation8 + $0x1c] sm:$0xf]
    %v358 = vld [vmem:[#allocation8 + $0x20] sm:$0xf]
    %v359 = vld [vmem:[#allocation8 + $0x24] sm:$0xf]
    %v360 = vld [vmem:[#allocation8 + $0x28] sm:$0xf]
    %v361 = vld [vmem:[#allocation8 + $0x2c] sm:$0xf]
    %v362 = vld [vmem:[#allocation8 + $0x30] sm:$0xf]
    %v363 = vld [vmem:[#allocation8 + $0x34] sm:$0xf]
    %v364 = vld [vmem:[#allocation8 + $0x38] sm:$0xf]
    %v365 = vld [vmem:[#allocation8 + $0x3c] sm:$0xf]
    %v366 = vld [vmem:[%s8] sm:$0x1]
    %v368 = vperm.slane %v366, 0
    %v386 = vunpack.c.l.b16 %v350
    %v387 = vunpack.c.l.b16 %v351
    %v388 = vunpack.c.l.b16 %v352
    %v389 = vunpack.c.l.b16 %v353
    %v390 = vunpack.c.l.b16 %v354
    %v391 = vunpack.c.l.b16 %v355
    %v392 = vunpack.c.l.b16 %v356
    %v393 = vunpack.c.l.b16 %v357
    %v394 = vunpack.c.l.b16 %v358
    %v395 = vunpack.c.l.b16 %v359
    %v396 = vunpack.c.l.b16 %v360
    %v397 = vunpack.c.l.b16 %v361
    %v398 = vunpack.c.l.b16 %v362
    %v399 = vunpack.c.l.b16 %v363
    %v400 = vunpack.c.l.b16 %v364
    %v401 = vunpack.c.l.b16 %v365
    %v402 = vpack.c.b16 %v387, %v386
    %v403 = vpack.c.b16 %v389, %v388
    %v404 = vpack.c.b16 %v391, %v390
    %v405 = vpack.c.b16 %v393, %v392
    %v406 = vpack.c.b16 %v395, %v394
    %v407 = vpack.c.b16 %v397, %v396
    %v408 = vpack.c.b16 %v399, %v398
    %v409 = vpack.c.b16 %v401, %v400
    %418 = vmatpush.bf16.msra.mxu0 %v409
    %419 = vmatpush.bf16.msra.mxu0 %v408
    %420 = vmatpush.bf16.msra.mxu0 %v407
    %421 = vmatpush.bf16.msra.mxu0 %v406
    %422 = vmatpush.bf16.msra.mxu0 %v405
    %423 = vmatpush.bf16.msra.mxu0 %v404
    %424 = vmatpush.bf16.msra.mxu0 %v403
    %425 = vmatpush.bf16.msra.mxu0 %v402
    %426 = vmatmul.bf16.gmra.mxu0 %v349
    %v427 = vpop.f32.mrf.mxu0
    %v428 = vadd.f32 %v368, %v427
    %v429 = vpop.f32.mrf.mxu0
    %430 = vdwg.mxu0
    %v431 = vmax.f32 %v428, 0.0
    %432 = vst [vmem:[#allocation10] sm:$0xff] %v431
    // Predicated region
    $region54: #{tpu_custom_call.1} parent=1 // pred_check
      _
    $region55: #{tpu_custom_call.1} parent=1 // pred_check_branch
      %434 = sbr.rel (0) target = $region57
    $region56: #{tpu_custom_call.1} parent=1 // pred_region
      %436 = vsyncadd [#allocation4], 0
      %s438 = sshll.u32 [#allocation10], 4
      %s439 = int_to_ptr.vmem [resolvable:$true] %s438
      %s440 = sshll.u32 %s9, 4
      %s441 = int_to_ptr.hbm [resolvable:$true] %s440
      %443 = dma.vmem_to_hbm [thread:$0]  %s439, 128, %s441, [#allocation4]
    $region57: #{tpu_custom_call.1} parent=1 // pred_fallthru
      _
    // Predicated region
    $region58: #{tpu_custom_call.1} parent=1 // pred_check
      _
    $region59: #{tpu_custom_call.1} parent=1 // pred_check_branch
      %445 = sbr.rel (0) target = $region61
    $region60: #{tpu_custom_call.1} parent=1 // pred_region
      %447 = dma.done [#allocation4], 128
    $region61: #{tpu_custom_call.1} parent=1 // pred_fallthru
      _
    %448 = vsyncpa [#allocation3], 1
    %449 = vsyncpa [#allocation6], 1
    %450 = vsyncpa [#allocation9], 1
    %451 = vsyncpa [#allocation4], 1

</llo_original>
